<compile_context>
chip_gen: v5e
topology: v5e:2x2
jax: 0.10.0
libtpu: 0.0.40
codegen_flags: <defaults>
</compile_context>

<pallas_src>
import jax
import jax.numpy as jnp
from jax.experimental import pallas as pl
from jax.experimental.pallas import tpu as pltpu


def _round_up(x, m):
    return (x + m - 1) // m * m


def _cdiv(a, b):
    return (a + b - 1) // b


def _q_head(obs, act, w1o_ref, w1a_ref, b1_ref, w2_ref, b2_ref, w3_ref, b3_ref):
    # Layer 1: fused "concat" -> two MXU dots into one f32 accumulator, bias + ReLU in f32.
    h1 = jnp.dot(obs, w1o_ref[...], preferred_element_type=jnp.float32)
    h1 = h1 + jnp.dot(act, w1a_ref[...], preferred_element_type=jnp.float32)
    h1 = jnp.maximum(h1 + b1_ref[...], 0.0).astype(jnp.bfloat16)
    # Layer 2: MXU dot on the 128-lane-aligned [Hp, Hp] weight, bias + ReLU in f32.
    h2 = jnp.dot(h1, w2_ref[...], preferred_element_type=jnp.float32)
    h2 = jnp.maximum(h2 + b2_ref[...], 0.0)
    # Layer 3: N=1 matmul replaced by VPU multiply + lane reduction against the (1, Hp) row.
    q = jnp.sum(h2 * w3_ref[...].astype(jnp.float32), axis=-1)
    return q + b3_ref[0]


def critic_kernel(obs_ref, act_ref,
                  w1o1_ref, w1a1_ref, b11_ref, w21_ref, b21_ref, w31_ref, b31_ref,
                  w1o2_ref, w1a2_ref, b12_ref, w22_ref, b22_ref, w32_ref, b32_ref,
                  q_ref):
    obs = obs_ref[...]
    act = act_ref[...]
    q1 = _q_head(obs, act, w1o1_ref, w1a1_ref, b11_ref, w21_ref, b21_ref, w31_ref, b31_ref)
    q2 = _q_head(obs, act, w1o2_ref, w1a2_ref, b12_ref, w22_ref, b22_ref, w32_ref, b32_ref)
    q_ref[...] = jnp.stack([q1, q2], axis=0).astype(q_ref.dtype)


def prepare_qfunction_params(params, obs_dim, lane_align=128):
    """Hoisted (one-time) weight prep: bf16 cast, w1 row split, w3 transpose, and
    zero-padding of the hidden dim to a multiple of `lane_align` (MXU lane width).
    ReLU preserves zeros, so the padded columns are exact no-ops."""
    w1, b1, w2, b2, w3, b3 = params
    hidden = w2.shape[0]
    hp = _round_up(hidden, lane_align)
    ph = hp - hidden
    return (
        jnp.pad(w1[:obs_dim], ((0, 0), (0, ph))).astype(jnp.bfloat16),       # [obs_dim, Hp]
        jnp.pad(w1[obs_dim:], ((0, 0), (0, ph))).astype(jnp.bfloat16),       # [act_dim, Hp]
        jnp.pad(b1, ((0, 0), (0, ph))).astype(jnp.float32),                  # [1, Hp]
        jnp.pad(w2, ((0, ph), (0, ph))).astype(jnp.bfloat16),                # [Hp, Hp]
        jnp.pad(b2, ((0, 0), (0, ph))).astype(jnp.float32),                  # [1, Hp]
        jnp.pad(jnp.transpose(w3), ((0, 0), (0, ph))).astype(jnp.bfloat16),  # [1, Hp]
        jnp.reshape(b3, (1,)).astype(jnp.float32),                           # [1] SMEM scalar
    )


def critic_forward(obs, action, q1_prepped, q2_prepped, *, max_rows_per_tile=512):
    """obs: [B, obs_dim] encoder features, action: [B, action_dim];
    q*_prepped: output of prepare_qfunction_params.  Returns (q1, q2), each [B, 1] f32."""
    assert obs.shape[0] == action.shape[0]
    B, obs_dim = obs.shape
    act_dim = action.shape[1]
    hp = q1_prepped[3].shape[0]
    in_dim = obs_dim + act_dim

    # --- batch tiling -------------------------------------------------------------------
    rows = _round_up(B, 16)                      # bf16 packs 2 rows / sublane
    num_tiles = _cdiv(rows, max_rows_per_tile)
    if num_tiles == 1 and rows >= 256:
        num_tiles = 2                            # give v7x megacore both TensorCores work
    if num_tiles == 1:
        tb = rows                                # block == full (padded) dims
    else:
        tb = _round_up(_cdiv(B, num_tiles), 128)  # lane-dense (2, tb) output blocks
    padded_b = tb * num_tiles

    def pad_rows(x):
        return jnp.pad(x, ((0, padded_b - B), (0, 0))) if padded_b != B else x

    obs_bf16 = pad_rows(obs.astype(jnp.bfloat16))
    act_bf16 = pad_rows(action.astype(jnp.bfloat16))

    # --- specs --------------------------------------------------------------------------
    # Grid-invariant weights/biases: unblocked VMEM operands -> a single VMEM-resident copy
    # (not part of the batch pipeline, so no double-buffered duplicates).  b3 via SMEM.
    vmem_resident = pl.BlockSpec(memory_space=pltpu.MemorySpace.VMEM)
    smem_scalar = pl.BlockSpec(memory_space=pltpu.MemorySpace.SMEM)
    head_specs = [vmem_resident] * 6 + [smem_scalar]

    # --- explicit VMEM budget & cost estimate -------------------------------------------
    weights_bytes = 2 * ((in_dim * hp + hp * hp + hp) * 2 + 2 * hp * 4)   # single copy, 2 heads
    io_bytes = 2 * (2 * tb * in_dim * 2 + 2 * 2 * tb * 4)                 # double-buffered tiles
    tmp_bytes = 2 * tb * hp * (2 + 4)                                     # h1 bf16 + h2 f32
    vmem_limit = int(1.5 * (weights_bytes + io_bytes + tmp_bytes)) + (2 << 20)
    vmem_limit = min(max(vmem_limit, 16 << 20), 64 << 20)                 # cap at v7x per-TC VMEM

    flops = 2 * (2 * padded_b * in_dim * hp + 2 * padded_b * hp * hp + 3 * padded_b * hp)
    bytes_accessed = padded_b * in_dim * 2 + weights_bytes + 2 * padded_b * 4

    q = pl.pallas_call(
        critic_kernel,
        out_shape=jax.ShapeDtypeStruct((2, padded_b), jnp.float32),
        grid=(num_tiles,),
        in_specs=[
            pl.BlockSpec((tb, obs_dim), lambda i: (i, 0)),
            pl.BlockSpec((tb, act_dim), lambda i: (i, 0)),
        ] + head_specs + head_specs,
        out_specs=pl.BlockSpec((2, tb), lambda i: (0, i)),
        compiler_params=pltpu.CompilerParams(
            dimension_semantics=("parallel",),
            vmem_limit_bytes=vmem_limit,
        ),
        cost_estimate=pl.CostEstimate(
            flops=flops, transcendentals=0, bytes_accessed=bytes_accessed),
    )(obs_bf16, act_bf16, *q1_prepped, *q2_prepped)

    q1 = q[0, :B].reshape(B, 1)
    q2 = q[1, :B].reshape(B, 1)
    return q1, q2


# ------------------------------ init & pure-JAX reference -------------------------------

def orthogonal_like_torch(key, out_features, in_features):
    """Orthogonal init matching nn.init.orthogonal_ on a (out, in) matrix,
    returned transposed as (in, out) so the kernel computes x @ W."""
    w = jax.nn.initializers.orthogonal(scale=1.0)(
        key, (out_features, in_features), jnp.float32
    )
    return jnp.transpose(w)


def init_qfunction_params(key, obs_dim, action_dim, hidden_dim):
    k1, k2, k3 = jax.random.split(key, 3)
    in_dim = obs_dim + action_dim
    w1 = orthogonal_like_torch(k1, hidden_dim, in_dim)       # [in_dim, H]
    b1 = jnp.zeros((1, hidden_dim), jnp.float32)
    w2 = orthogonal_like_torch(k2, hidden_dim, hidden_dim)   # [H, H]
    b2 = jnp.zeros((1, hidden_dim), jnp.float32)
    w3 = orthogonal_like_torch(k3, 1, hidden_dim)            # [H, 1]
    b3 = jnp.zeros((1, 1), jnp.float32)
    return (w1, b1, w2, b2, w3, b3)


def reference_qfunction(obs, action, params):
    """Pure-JAX reference with the same bf16 input / f32 accumulation numerics."""
    w1, b1, w2, b2, w3, b3 = params
    x = jnp.concatenate([obs, action], axis=1).astype(jnp.bfloat16)
    h1 = jnp.dot(x, w1.astype(jnp.bfloat16), preferred_element_type=jnp.float32)
    h1 = jnp.maximum(h1 + b1, 0.0).astype(jnp.bfloat16)
    h2 = jnp.dot(h1, w2.astype(jnp.bfloat16), preferred_element_type=jnp.float32)
    h2 = jnp.maximum(h2 + b2, 0.0)
    w3_row = jnp.transpose(w3).astype(jnp.bfloat16).astype(jnp.float32)
    q = jnp.sum(h2 * w3_row, axis=-1, keepdims=True) + b3
    return q


if __name__ == "__main__":
    obs_dim, action_dim, hidden_dim = 16, 4, 32   # encoder.out_dim = 16
    batch = 2

    key = jax.random.PRNGKey(0)
    k_obs, k_act, k_p1, k_p2 = jax.random.split(key, 4)

    obs = jax.random.normal(k_obs, (batch, obs_dim), jnp.float32)
    action = jax.random.normal(k_act, (batch, action_dim), jnp.float32)
    q1_params = init_qfunction_params(k_p1, obs_dim, action_dim, hidden_dim)
    q2_params = init_qfunction_params(k_p2, obs_dim, action_dim, hidden_dim)

    # Weight prep (bf16 cast / split / transpose / 128-lane padding) is hoisted here and
    # done exactly once, outside the forward path.
    p1 = prepare_qfunction_params(q1_params, obs_dim)
    p2 = prepare_qfunction_params(q2_params, obs_dim)

    q1, q2 = critic_forward(obs, action, p1, p2)
    jax.block_until_ready((q1, q2))

    q1_ref = reference_qfunction(obs, action, q1_params)
    q2_ref = reference_qfunction(obs, action, q2_params)

    assert q1.shape == (batch, 1) and q2.shape == (batch, 1)
    assert jnp.allclose(q1, q1_ref, atol=1e-3, rtol=1e-3)
    assert jnp.allclose(q2, q2_ref, atol=1e-3, rtol=1e-3)

    print("KERNEL_OK")
</pallas_src>

<mosaic_0001>
module attributes {stable_mosaic.version = 11 : i64} {
  func.func @critic_kernel(%arg0: i32, %arg1: memref<16x16xbf16, #tpu.memory_space<vmem>>, %arg2: memref<16x4xbf16, #tpu.memory_space<vmem>>, %arg3: memref<16x128xbf16, #tpu.memory_space<vmem>>, %arg4: memref<4x128xbf16, #tpu.memory_space<vmem>>, %arg5: memref<1x128xf32, #tpu.memory_space<vmem>>, %arg6: memref<128x128xbf16, #tpu.memory_space<vmem>>, %arg7: memref<1x128xf32, #tpu.memory_space<vmem>>, %arg8: memref<1x128xbf16, #tpu.memory_space<vmem>>, %arg9: memref<1xf32, #tpu.memory_space<smem>>, %arg10: memref<16x128xbf16, #tpu.memory_space<vmem>>, %arg11: memref<4x128xbf16, #tpu.memory_space<vmem>>, %arg12: memref<1x128xf32, #tpu.memory_space<vmem>>, %arg13: memref<128x128xbf16, #tpu.memory_space<vmem>>, %arg14: memref<1x128xf32, #tpu.memory_space<vmem>>, %arg15: memref<1x128xbf16, #tpu.memory_space<vmem>>, %arg16: memref<1xf32, #tpu.memory_space<smem>>, %arg17: memref<2x16xf32, #tpu.memory_space<vmem>>) attributes {dimension_semantics = [#tpu.dimension_semantics<parallel>], iteration_bounds = array<i64: 1>, scalar_prefetch = 0 : i64, scratch_operands = 0 : i64, tpu.core_type = #tpu.core_type<tc>, window_params = [{transform_indices = @transform_0, window_bounds = array<i64: 16, 16>}, {transform_indices = @transform_1, window_bounds = array<i64: 16, 4>}, {pipeline_mode = #tpu.pipeline_mode<synchronous>, transform_indices = @transform_2, window_bounds = array<i64: 16, 128>}, {pipeline_mode = #tpu.pipeline_mode<synchronous>, transform_indices = @transform_3, window_bounds = array<i64: 4, 128>}, {pipeline_mode = #tpu.pipeline_mode<synchronous>, transform_indices = @transform_4, window_bounds = array<i64: 1, 128>}, {pipeline_mode = #tpu.pipeline_mode<synchronous>, transform_indices = @transform_5, window_bounds = array<i64: 128, 128>}, {pipeline_mode = #tpu.pipeline_mode<synchronous>, transform_indices = @transform_6, window_bounds = array<i64: 1, 128>}, {pipeline_mode = #tpu.pipeline_mode<synchronous>, transform_indices = @transform_7, window_bounds = array<i64: 1, 128>}, {transform_indices = @transform_8, window_bounds = array<i64: 1>}, {pipeline_mode = #tpu.pipeline_mode<synchronous>, transform_indices = @transform_9, window_bounds = array<i64: 16, 128>}, {pipeline_mode = #tpu.pipeline_mode<synchronous>, transform_indices = @transform_10, window_bounds = array<i64: 4, 128>}, {pipeline_mode = #tpu.pipeline_mode<synchronous>, transform_indices = @transform_11, window_bounds = array<i64: 1, 128>}, {pipeline_mode = #tpu.pipeline_mode<synchronous>, transform_indices = @transform_12, window_bounds = array<i64: 128, 128>}, {pipeline_mode = #tpu.pipeline_mode<synchronous>, transform_indices = @transform_13, window_bounds = array<i64: 1, 128>}, {pipeline_mode = #tpu.pipeline_mode<synchronous>, transform_indices = @transform_14, window_bounds = array<i64: 1, 128>}, {transform_indices = @transform_15, window_bounds = array<i64: 1>}, {transform_indices = @transform_16, window_bounds = array<i64: 2, 16>}]} {
    %c0 = arith.constant 0 : index
    %c0_0 = arith.constant 0 : index
    %0 = vector.load %arg1[%c0, %c0_0] : memref<16x16xbf16, #tpu.memory_space<vmem>>, vector<16x16xbf16>
    %c0_1 = arith.constant 0 : index
    %c0_2 = arith.constant 0 : index
    %1 = vector.load %arg2[%c0_1, %c0_2] : memref<16x4xbf16, #tpu.memory_space<vmem>>, vector<16x4xbf16>
    %c0_3 = arith.constant 0 : index
    %c0_4 = arith.constant 0 : index
    %2 = vector.load %arg3[%c0_3, %c0_4] : memref<16x128xbf16, #tpu.memory_space<vmem>>, vector<16x128xbf16>
    %cst = arith.constant dense<0.000000e+00> : vector<16x128xf32>
    %3 = tpu.matmul %0, %2, %cst {dimension_numbers = #tpu.dot_dimension_numbers<[1], [0], [0], [1], [0, 0, 1, 1], [], []>} : vector<16x16xbf16>, vector<16x128xbf16>, vector<16x128xf32> -> vector<16x128xf32>
    %c0_5 = arith.constant 0 : index
    %c0_6 = arith.constant 0 : index
    %4 = vector.load %arg4[%c0_5, %c0_6] : memref<4x128xbf16, #tpu.memory_space<vmem>>, vector<4x128xbf16>
    %cst_7 = arith.constant dense<0.000000e+00> : vector<16x128xf32>
    %5 = tpu.matmul %1, %4, %cst_7 {dimension_numbers = #tpu.dot_dimension_numbers<[1], [0], [0], [1], [0, 0, 1, 1], [], []>} : vector<16x4xbf16>, vector<4x128xbf16>, vector<16x128xf32> -> vector<16x128xf32>
    %6 = arith.addf %3, %5 : vector<16x128xf32>
    %c0_8 = arith.constant 0 : index
    %c0_9 = arith.constant 0 : index
    %7 = vector.load %arg5[%c0_8, %c0_9] : memref<1x128xf32, #tpu.memory_space<vmem>>, vector<1x128xf32>
    %8 = vector.broadcast %7 : vector<1x128xf32> to vector<16x128xf32>
    %9 = arith.addf %6, %8 : vector<16x128xf32>
    %cst_10 = arith.constant 0.000000e+00 : f32
    %10 = vector.broadcast %cst_10 : f32 to vector<16x128xf32>
    %11 = arith.maximumf %9, %10 : vector<16x128xf32>
    %12 = arith.truncf %11 : vector<16x128xf32> to vector<16x128xbf16>
    %c0_11 = arith.constant 0 : index
    %c0_12 = arith.constant 0 : index
    %13 = vector.load %arg6[%c0_11, %c0_12] : memref<128x128xbf16, #tpu.memory_space<vmem>>, vector<128x128xbf16>
    %cst_13 = arith.constant dense<0.000000e+00> : vector<16x128xf32>
    %14 = tpu.matmul %12, %13, %cst_13 {dimension_numbers = #tpu.dot_dimension_numbers<[1], [0], [0], [1], [0, 0, 1, 1], [], []>} : vector<16x128xbf16>, vector<128x128xbf16>, vector<16x128xf32> -> vector<16x128xf32>
    %c0_14 = arith.constant 0 : index
    %c0_15 = arith.constant 0 : index
    %15 = vector.load %arg7[%c0_14, %c0_15] : memref<1x128xf32, #tpu.memory_space<vmem>>, vector<1x128xf32>
    %16 = vector.broadcast %15 : vector<1x128xf32> to vector<16x128xf32>
    %17 = arith.addf %14, %16 : vector<16x128xf32>
    %cst_16 = arith.constant 0.000000e+00 : f32
    %18 = vector.broadcast %cst_16 : f32 to vector<16x128xf32>
    %19 = arith.maximumf %17, %18 : vector<16x128xf32>
    %c0_17 = arith.constant 0 : index
    %c0_18 = arith.constant 0 : index
    %20 = vector.load %arg8[%c0_17, %c0_18] : memref<1x128xbf16, #tpu.memory_space<vmem>>, vector<1x128xbf16>
    %21 = arith.extf %20 : vector<1x128xbf16> to vector<1x128xf32>
    %22 = vector.broadcast %21 : vector<1x128xf32> to vector<16x128xf32>
    %23 = arith.mulf %19, %22 : vector<16x128xf32>
    %cst_19 = arith.constant dense<0.000000e+00> : vector<16xf32>
    %24 = vector.multi_reduction <add>, %23, %cst_19 [1] : vector<16x128xf32> to vector<16xf32>
    %c0_20 = arith.constant 0 : index
    %25 = memref.load %arg9[%c0_20] : memref<1xf32, #tpu.memory_space<smem>>
    %26 = vector.broadcast %25 : f32 to vector<16xf32>
    %27 = arith.addf %24, %26 : vector<16xf32>
    %c0_21 = arith.constant 0 : index
    %c0_22 = arith.constant 0 : index
    %28 = vector.load %arg10[%c0_21, %c0_22] : memref<16x128xbf16, #tpu.memory_space<vmem>>, vector<16x128xbf16>
    %cst_23 = arith.constant dense<0.000000e+00> : vector<16x128xf32>
    %29 = tpu.matmul %0, %28, %cst_23 {dimension_numbers = #tpu.dot_dimension_numbers<[1], [0], [0], [1], [0, 0, 1, 1], [], []>} : vector<16x16xbf16>, vector<16x128xbf16>, vector<16x128xf32> -> vector<16x128xf32>
    %c0_24 = arith.constant 0 : index
    %c0_25 = arith.constant 0 : index
    %30 = vector.load %arg11[%c0_24, %c0_25] : memref<4x128xbf16, #tpu.memory_space<vmem>>, vector<4x128xbf16>
    %cst_26 = arith.constant dense<0.000000e+00> : vector<16x128xf32>
    %31 = tpu.matmul %1, %30, %cst_26 {dimension_numbers = #tpu.dot_dimension_numbers<[1], [0], [0], [1], [0, 0, 1, 1], [], []>} : vector<16x4xbf16>, vector<4x128xbf16>, vector<16x128xf32> -> vector<16x128xf32>
    %32 = arith.addf %29, %31 : vector<16x128xf32>
    %c0_27 = arith.constant 0 : index
    %c0_28 = arith.constant 0 : index
    %33 = vector.load %arg12[%c0_27, %c0_28] : memref<1x128xf32, #tpu.memory_space<vmem>>, vector<1x128xf32>
    %34 = vector.broadcast %33 : vector<1x128xf32> to vector<16x128xf32>
    %35 = arith.addf %32, %34 : vector<16x128xf32>
    %cst_29 = arith.constant 0.000000e+00 : f32
    %36 = vector.broadcast %cst_29 : f32 to vector<16x128xf32>
    %37 = arith.maximumf %35, %36 : vector<16x128xf32>
    %38 = arith.truncf %37 : vector<16x128xf32> to vector<16x128xbf16>
    %c0_30 = arith.constant 0 : index
    %c0_31 = arith.constant 0 : index
    %39 = vector.load %arg13[%c0_30, %c0_31] : memref<128x128xbf16, #tpu.memory_space<vmem>>, vector<128x128xbf16>
    %cst_32 = arith.constant dense<0.000000e+00> : vector<16x128xf32>
    %40 = tpu.matmul %38, %39, %cst_32 {dimension_numbers = #tpu.dot_dimension_numbers<[1], [0], [0], [1], [0, 0, 1, 1], [], []>} : vector<16x128xbf16>, vector<128x128xbf16>, vector<16x128xf32> -> vector<16x128xf32>
    %c0_33 = arith.constant 0 : index
    %c0_34 = arith.constant 0 : index
    %41 = vector.load %arg14[%c0_33, %c0_34] : memref<1x128xf32, #tpu.memory_space<vmem>>, vector<1x128xf32>
    %42 = vector.broadcast %41 : vector<1x128xf32> to vector<16x128xf32>
    %43 = arith.addf %40, %42 : vector<16x128xf32>
    %cst_35 = arith.constant 0.000000e+00 : f32
    %44 = vector.broadcast %cst_35 : f32 to vector<16x128xf32>
    %45 = arith.maximumf %43, %44 : vector<16x128xf32>
    %c0_36 = arith.constant 0 : index
    %c0_37 = arith.constant 0 : index
    %46 = vector.load %arg15[%c0_36, %c0_37] : memref<1x128xbf16, #tpu.memory_space<vmem>>, vector<1x128xbf16>
    %47 = arith.extf %46 : vector<1x128xbf16> to vector<1x128xf32>
    %48 = vector.broadcast %47 : vector<1x128xf32> to vector<16x128xf32>
    %49 = arith.mulf %45, %48 : vector<16x128xf32>
    %cst_38 = arith.constant dense<0.000000e+00> : vector<16xf32>
    %50 = vector.multi_reduction <add>, %49, %cst_38 [1] : vector<16x128xf32> to vector<16xf32>
    %c0_39 = arith.constant 0 : index
    %51 = memref.load %arg16[%c0_39] : memref<1xf32, #tpu.memory_space<smem>>
    %52 = vector.broadcast %51 : f32 to vector<16xf32>
    %53 = arith.addf %50, %52 : vector<16xf32>
    %54 = vector.shape_cast %27 : vector<16xf32> to vector<1x16xf32>
    %55 = vector.shape_cast %53 : vector<16xf32> to vector<1x16xf32>
    %56 = tpu.concatenate %54, %55 in 0 : vector<1x16xf32>, vector<1x16xf32> -> vector<2x16xf32>
    %c0_40 = arith.constant 0 : index
    %c0_41 = arith.constant 0 : index
    %57 = vector.load %arg17[%c0_40, %c0_41] : memref<2x16xf32, #tpu.memory_space<vmem>>, vector<2x16xf32>
    tpu.vector_store %arg17[%c0_40, %c0_41], %56 {strides = array<i32>} : memref<2x16xf32, #tpu.memory_space<vmem>>, vector<2x16xf32>,
    return
  }
  func.func @transform_0(%arg0: i32) -> (i32, i32) {
    %c0_i32 = arith.constant 0 : i32
    %c0_i32_0 = arith.constant 0 : i32
    return %arg0, %c0_i32 : i32, i32
  }
  func.func @transform_1(%arg0: i32) -> (i32, i32) {
    %c0_i32 = arith.constant 0 : i32
    %c0_i32_0 = arith.constant 0 : i32
    return %arg0, %c0_i32 : i32, i32
  }
  func.func @transform_2(%arg0: i32) -> (i32, i32) {
    %c0_i32 = arith.constant 0 : i32
    %c0_i32_0 = arith.constant 0 : i32
    %c0_i32_1 = arith.constant 0 : i32
    return %c0_i32, %c0_i32_0 : i32, i32
  }
  func.func @transform_3(%arg0: i32) -> (i32, i32) {
    %c0_i32 = arith.constant 0 : i32
    %c0_i32_0 = arith.constant 0 : i32
    %c0_i32_1 = arith.constant 0 : i32
    return %c0_i32, %c0_i32_0 : i32, i32
  }
  func.func @transform_4(%arg0: i32) -> (i32, i32) {
    %c0_i32 = arith.constant 0 : i32
    %c0_i32_0 = arith.constant 0 : i32
    %c0_i32_1 = arith.constant 0 : i32
    return %c0_i32, %c0_i32_0 : i32, i32
  }
  func.func @transform_5(%arg0: i32) -> (i32, i32) {
    %c0_i32 = arith.constant 0 : i32
    %c0_i32_0 = arith.constant 0 : i32
    %c0_i32_1 = arith.constant 0 : i32
    return %c0_i32, %c0_i32_0 : i32, i32
  }
  func.func @transform_6(%arg0: i32) -> (i32, i32) {
    %c0_i32 = arith.constant 0 : i32
    %c0_i32_0 = arith.constant 0 : i32
    %c0_i32_1 = arith.constant 0 : i32
    return %c0_i32, %c0_i32_0 : i32, i32
  }
  func.func @transform_7(%arg0: i32) -> (i32, i32) {
    %c0_i32 = arith.constant 0 : i32
    %c0_i32_0 = arith.constant 0 : i32
    %c0_i32_1 = arith.constant 0 : i32
    return %c0_i32, %c0_i32_0 : i32, i32
  }
  func.func @transform_8(%arg0: i32) -> i32 {
    %c0_i32 = arith.constant 0 : i32
    %c0_i32_0 = arith.constant 0 : i32
    return %c0_i32 : i32
  }
  func.func @transform_9(%arg0: i32) -> (i32, i32) {
    %c0_i32 = arith.constant 0 : i32
    %c0_i32_0 = arith.constant 0 : i32
    %c0_i32_1 = arith.constant 0 : i32
    return %c0_i32, %c0_i32_0 : i32, i32
  }
  func.func @transform_10(%arg0: i32) -> (i32, i32) {
    %c0_i32 = arith.constant 0 : i32
    %c0_i32_0 = arith.constant 0 : i32
    %c0_i32_1 = arith.constant 0 : i32
    return %c0_i32, %c0_i32_0 : i32, i32
  }
  func.func @transform_11(%arg0: i32) -> (i32, i32) {
    %c0_i32 = arith.constant 0 : i32
    %c0_i32_0 = arith.constant 0 : i32
    %c0_i32_1 = arith.constant 0 : i32
    return %c0_i32, %c0_i32_0 : i32, i32
  }
  func.func @transform_12(%arg0: i32) -> (i32, i32) {
    %c0_i32 = arith.constant 0 : i32
    %c0_i32_0 = arith.constant 0 : i32
    %c0_i32_1 = arith.constant 0 : i32
    return %c0_i32, %c0_i32_0 : i32, i32
  }
  func.func @transform_13(%arg0: i32) -> (i32, i32) {
    %c0_i32 = arith.constant 0 : i32
    %c0_i32_0 = arith.constant 0 : i32
    %c0_i32_1 = arith.constant 0 : i32
    return %c0_i32, %c0_i32_0 : i32, i32
  }
  func.func @transform_14(%arg0: i32) -> (i32, i32) {
    %c0_i32 = arith.constant 0 : i32
    %c0_i32_0 = arith.constant 0 : i32
    %c0_i32_1 = arith.constant 0 : i32
    return %c0_i32, %c0_i32_0 : i32, i32
  }
  func.func @transform_15(%arg0: i32) -> i32 {
    %c0_i32 = arith.constant 0 : i32
    %c0_i32_0 = arith.constant 0 : i32
    return %c0_i32 : i32
  }
  func.func @transform_16(%arg0: i32) -> (i32, i32) {
    %c0_i32 = arith.constant 0 : i32
    %c0_i32_0 = arith.constant 0 : i32
    return %c0_i32, %arg0 : i32, i32
  }
}

</mosaic_0001>

<llo_original>
// kernel: tpu_custom_call.1
$region0: #{tpu_custom_call.1}
  #allocation0 [shape = 'u32[]', space=smem, size = 0x4, offset = 0x4, fixed_abs, tag = 'smem constant byte address 0x4 - core index']
  #allocation1 [shape = 'u32[72,128]{1,0:T(1,128)}', space=vmem, size = 0x9000, scoped, tag = 'internal scratch']
  #allocation2 [shape = 'f32[1]{0:T(128)S(6)}', space=smem, size = 0x200, scoped, tag = 'scoped memory for tpu_custom_call.1']
  #allocation3 [shape = 'f32[1]{0:T(128)S(6)}', space=smem, size = 0x200, scoped, tag = 'scoped memory for tpu_custom_call.1']
  %s0 = inlined_call_operand.vmem [shape: bf16[16,16], index: 0, kind: input, shape index: {}]
  %s1 = inlined_call_operand.vmem [shape: bf16[16,4], index: 1, kind: input, shape index: {}]
  %s2 = inlined_call_operand.hbm [shape: bf16[16,128], index: 2, kind: input, shape index: {}]
  %s3 = inlined_call_operand.hbm [shape: bf16[4,128], index: 3, kind: input, shape index: {}]
  %s4 = inlined_call_operand.hbm [shape: f32[1,128], index: 4, kind: input, shape index: {}]
  %s5 = inlined_call_operand.hbm [shape: bf16[128,128], index: 5, kind: input, shape index: {}]
  %s6 = inlined_call_operand.vmem [shape: f32[1,128], index: 6, kind: input, shape index: {}]
  %s7 = inlined_call_operand.vmem [shape: bf16[1,128], index: 7, kind: input, shape index: {}]
  %s8 = inlined_call_operand.<no memory space> [shape: f32[1], index: 8, kind: input, shape index: {}]
  %s9 = inlined_call_operand.vmem [shape: bf16[16,128], index: 9, kind: input, shape index: {}]
  %s10 = inlined_call_operand.vmem [shape: bf16[4,128], index: 10, kind: input, shape index: {}]
  %s11 = inlined_call_operand.vmem [shape: f32[1,128], index: 11, kind: input, shape index: {}]
  %s12 = inlined_call_operand.hbm [shape: bf16[128,128], index: 12, kind: input, shape index: {}]
  %s13 = inlined_call_operand.vmem [shape: f32[1,128], index: 13, kind: input, shape index: {}]
  %s14 = inlined_call_operand.vmem [shape: bf16[1,128], index: 14, kind: input, shape index: {}]
  %s15 = inlined_call_operand.<no memory space> [shape: f32[1], index: 15, kind: input, shape index: {}]
  %s16 = inlined_call_operand.hbm [shape: f32[2,16], index: 16, kind: output, shape index: {}]
  %s17 = sld [smem:[#allocation0]]
  $region94: #{tpu_custom_call.1} parent=0
    _
  %s19 = ssub.s32 1, %s17
  %s20 = scalar_select 0, %s19, %s17
  %21 = sst [smem:[#allocation2]] %s8
  %22 = sst [smem:[#allocation3]] %s15
  $region1: #{tpu_custom_call.1} parent=0
    #allocation4 [shape = 'u8[4096]{0}', space=vmem, size = 0x1000, scoped, tag = 'input window, operand 2, single buffered']
    #allocation5 [shape = 's32[1]{0}', space=sflag, size = 0x4, scoped, tag = 'scoped memory for tpu_custom_call.1']
    #allocation6 [shape = 's32[1]{0}', space=sflag, size = 0x4, scoped, tag = 'scoped memory for tpu_custom_call.1']
    #allocation7 [shape = 'u8[1024]{0}', space=vmem, size = 0x400, scoped, tag = 'input window, operand 3, single buffered']
    #allocation8 [shape = 's32[1]{0}', space=sflag, size = 0x4, scoped, tag = 'scoped memory for tpu_custom_call.1']
    #allocation9 [shape = 'u8[512]{0}', space=vmem, size = 0x400, scoped, tag = 'input window, operand 4, single buffered']
    #allocation10 [shape = 'u8[32768]{0}', space=vmem, size = 0x8000, scoped, tag = 'input window, operand 5, single buffered']
    #allocation11 [shape = 's32[1]{0}', space=sflag, size = 0x4, scoped, tag = 'scoped memory for tpu_custom_call.1']
    #allocation12 [shape = 'u8[32768]{0}', space=vmem, size = 0x8000, scoped, tag = 'input window, operand 12, single buffered']
    #allocation13 [shape = 'u8[1024]{0}', space=vmem, size = 0x400, scoped, tag = 'output window, operand 0, single buffered']
    %23 = vsyncpa [#allocation5], 0
    %24 = vsyncpa [#allocation8], 0
    %25 = vsyncpa [#allocation11], 0
    %26 = vsyncpa [#allocation6], 0
    // Predicated region
    $region2: #{tpu_custom_call.1} parent=1 // pred_check
      _
    $region3: #{tpu_custom_call.1} parent=1 // pred_check_branch
      %28 = sbr.rel (0) target = $region5
    $region4: #{tpu_custom_call.1} parent=1 // pred_region
      _
    $region5: #{tpu_custom_call.1} parent=1 // pred_fallthru
      _
    // Predicated region
    $region6: #{tpu_custom_call.1} parent=1 // pred_check
      _
    $region7: #{tpu_custom_call.1} parent=1 // pred_check_branch
      %30 = sbr.rel (0) target = $region9
    $region8: #{tpu_custom_call.1} parent=1 // pred_region
      _
    $region9: #{tpu_custom_call.1} parent=1 // pred_fallthru
      _
    // Predicated region
    $region10: #{tpu_custom_call.1} parent=1 // pred_check
      _
    $region11: #{tpu_custom_call.1} parent=1 // pred_check_branch
      %32 = sbr.rel (0) target = $region13
    $region12: #{tpu_custom_call.1} parent=1 // pred_region
      %34 = vsyncadd [#allocation5], 0
      %s35 = sshll.u32 %s2, 4
      %s36 = int_to_ptr.hbm [resolvable:$true] %s35
      %s37 = sshll.u32 [#allocation4], 4
      %s38 = int_to_ptr.vmem [resolvable:$true] %s37
      %43 = dma.hbm_to_vmem [thread:$0]  %s36, 128, %s38, [#allocation5], 64, 64, 4
    $region13: #{tpu_custom_call.1} parent=1 // pred_fallthru
      _
    // Predicated region
    $region14: #{tpu_custom_call.1} parent=1 // pred_check
      _
    $region15: #{tpu_custom_call.1} parent=1 // pred_check_branch
      %45 = sbr.rel (0) target = $region17
    $region16: #{tpu_custom_call.1} parent=1 // pred_region
      %47 = vsyncadd [#allocation8], 0
      %s49 = sshll.u32 %s3, 4
      %s50 = int_to_ptr.hbm [resolvable:$true] %s49
      %s51 = sshll.u32 [#allocation7], 4
      %s52 = int_to_ptr.vmem [resolvable:$true] %s51
      %54 = dma.hbm_to_vmem [thread:$0]  %s50, 32, %s52, [#allocation8]
    $region17: #{tpu_custom_call.1} parent=1 // pred_fallthru
      _
    // Predicated region
    $region18: #{tpu_custom_call.1} parent=1 // pred_check
      _
    $region19: #{tpu_custom_call.1} parent=1 // pred_check_branch
      %56 = sbr.rel (0) target = $region21
    $region20: #{tpu_custom_call.1} parent=1 // pred_region
      %58 = vsyncadd [#allocation8], 0
      %s60 = sshll.u32 %s4, 4
      %s61 = int_to_ptr.hbm [resolvable:$true] %s60
      %s62 = sshll.u32 [#allocation9], 4
      %s63 = int_to_ptr.vmem [resolvable:$true] %s62
      %65 = dma.hbm_to_vmem [thread:$0]  %s61, 16, %s63, [#allocation8]
    $region21: #{tpu_custom_call.1} parent=1 // pred_fallthru
      _
    // Predicated region
    $region22: #{tpu_custom_call.1} parent=1 // pred_check
      _
    $region23: #{tpu_custom_call.1} parent=1 // pred_check_branch
      %67 = sbr.rel (0) target = $region25
    $region24: #{tpu_custom_call.1} parent=1 // pred_region
      %69 = vsyncadd [#allocation11], 0
      %s70 = sshll.u32 %s5, 4
      %s71 = int_to_ptr.hbm [resolvable:$true] %s70
      %s72 = sshll.u32 [#allocation10], 4
      %s73 = int_to_ptr.vmem [resolvable:$true] %s72
      %78 = dma.hbm_to_vmem [thread:$0]  %s71, 1024, %s73, [#allocation11], 64, 64, 4
    $region25: #{tpu_custom_call.1} parent=1 // pred_fallthru
      _
    // Predicated region
    $region26: #{tpu_custom_call.1} parent=1 // pred_check
      _
    $region27: #{tpu_custom_call.1} parent=1 // pred_check_branch
      %80 = sbr.rel (0) target = $region29
    $region28: #{tpu_custom_call.1} parent=1 // pred_region
      _
    $region29: #{tpu_custom_call.1} parent=1 // pred_fallthru
      _
    // Predicated region
    $region30: #{tpu_custom_call.1} parent=1 // pred_check
      _
    $region31: #{tpu_custom_call.1} parent=1 // pred_check_branch
      %82 = sbr.rel (0) target = $region33
    $region32: #{tpu_custom_call.1} parent=1 // pred_region
      _
    $region33: #{tpu_custom_call.1} parent=1 // pred_fallthru
      _
    // Predicated region
    $region34: #{tpu_custom_call.1} parent=1 // pred_check
      _
    $region35: #{tpu_custom_call.1} parent=1 // pred_check_branch
      %84 = sbr.rel (0) target = $region37
    $region36: #{tpu_custom_call.1} parent=1 // pred_region
      _
    $region37: #{tpu_custom_call.1} parent=1 // pred_fallthru
      _
    // Predicated region
    $region38: #{tpu_custom_call.1} parent=1 // pred_check
      _
    $region39: #{tpu_custom_call.1} parent=1 // pred_check_branch
      %86 = sbr.rel (0) target = $region41
    $region40: #{tpu_custom_call.1} parent=1 // pred_region
      _
    $region41: #{tpu_custom_call.1} parent=1 // pred_fallthru
      _
    // Predicated region
    $region42: #{tpu_custom_call.1} parent=1 // pred_check
      _
    $region43: #{tpu_custom_call.1} parent=1 // pred_check_branch
      %88 = sbr.rel (0) target = $region45
    $region44: #{tpu_custom_call.1} parent=1 // pred_region
      _
    $region45: #{tpu_custom_call.1} parent=1 // pred_fallthru
      _
    // Predicated region
    $region46: #{tpu_custom_call.1} parent=1 // pred_check
      _
    $region47: #{tpu_custom_call.1} parent=1 // pred_check_branch
      %90 = sbr.rel (0) target = $region49
    $region48: #{tpu_custom_call.1} parent=1 // pred_region
      _
    $region49: #{tpu_custom_call.1} parent=1 // pred_fallthru
      _
    // Predicated region
    $region50: #{tpu_custom_call.1} parent=1 // pred_check
      _
    $region51: #{tpu_custom_call.1} parent=1 // pred_check_branch
      %92 = sbr.rel (0) target = $region53
    $region52: #{tpu_custom_call.1} parent=1 // pred_region
      %94 = vsyncadd [#allocation11], 0
      %s95 = sshll.u32 %s12, 4
      %s96 = int_to_ptr.hbm [resolvable:$true] %s95
      %s97 = sshll.u32 [#allocation12], 4
      %s98 = int_to_ptr.vmem [resolvable:$true] %s97
      %103 = dma.hbm_to_vmem [thread:$0]  %s96, 1024, %s98, [#allocation11], 64, 64, 4
    $region53: #{tpu_custom_call.1} parent=1 // pred_fallthru
      _
    // Predicated region
    $region54: #{tpu_custom_call.1} parent=1 // pred_check
      _
    $region55: #{tpu_custom_call.1} parent=1 // pred_check_branch
      %105 = sbr.rel (0) target = $region57
    $region56: #{tpu_custom_call.1} parent=1 // pred_region
      _
    $region57: #{tpu_custom_call.1} parent=1 // pred_fallthru
      _
    // Predicated region
    $region58: #{tpu_custom_call.1} parent=1 // pred_check
      _
    $region59: #{tpu_custom_call.1} parent=1 // pred_check_branch
      %107 = sbr.rel (0) target = $region61
    $region60: #{tpu_custom_call.1} parent=1 // pred_region
      _
    $region61: #{tpu_custom_call.1} parent=1 // pred_fallthru
      _
    // Predicated region
    $region62: #{tpu_custom_call.1} parent=1 // pred_check
      _
    $region63: #{tpu_custom_call.1} parent=1 // pred_check_branch
      %109 = sbr.rel (0) target = $region65
    $region64: #{tpu_custom_call.1} parent=1 // pred_region
      _
    $region65: #{tpu_custom_call.1} parent=1 // pred_fallthru
      _
    // Predicated region
    $region66: #{tpu_custom_call.1} parent=1 // pred_check
      _
    $region67: #{tpu_custom_call.1} parent=1 // pred_check_branch
      %111 = sbr.rel (0) target = $region69
    $region68: #{tpu_custom_call.1} parent=1 // pred_region
      %113 = dma.done [#allocation5], 128
    $region69: #{tpu_custom_call.1} parent=1 // pred_fallthru
      _
    // Predicated region
    $region70: #{tpu_custom_call.1} parent=1 // pred_check
      _
    $region71: #{tpu_custom_call.1} parent=1 // pred_check_branch
      %115 = sbr.rel (0) target = $region73
    $region72: #{tpu_custom_call.1} parent=1 // pred_region
      %117 = dma.done [#allocation8], 32
    $region73: #{tpu_custom_call.1} parent=1 // pred_fallthru
      _
    // Predicated region
    $region74: #{tpu_custom_call.1} parent=1 // pred_check
      _
    $region75: #{tpu_custom_call.1} parent=1 // pred_check_branch
      %119 = sbr.rel (0) target = $region77
    $region76: #{tpu_custom_call.1} parent=1 // pred_region
      %121 = dma.done [#allocation8], 16
    $region77: #{tpu_custom_call.1} parent=1 // pred_fallthru
      _
    // Predicated region
    $region78: #{tpu_custom_call.1} parent=1 // pred_check
      _
    $region79: #{tpu_custom_call.1} parent=1 // pred_check_branch
      %123 = sbr.rel (0) target = $region81
    $region80: #{tpu_custom_call.1} parent=1 // pred_region
      %125 = dma.done [#allocation11], 1024
    $region81: #{tpu_custom_call.1} parent=1 // pred_fallthru
      _
    // Predicated region
    $region82: #{tpu_custom_call.1} parent=1 // pred_check
      _
    $region83: #{tpu_custom_call.1} parent=1 // pred_check_branch
      %127 = sbr.rel (0) target = $region85
    $region84: #{tpu_custom_call.1} parent=1 // pred_region
      %129 = dma.done [#allocation11], 1024
    $region85: #{tpu_custom_call.1} parent=1 // pred_fallthru
      _
    %v131 = vld [vmem:[%s0] sm:$0xf]
    %v132 = vld [vmem:[%s0 + $0x4] sm:$0xf]
    %v133 = vld [vmem:[%s1] sm:$0xf]
    %v134 = vld [vmem:[%s1 + $0x4] sm:$0xf]
    %v135 = vld [vmem:[#allocation4] sm:$0xf]
    %v136 = vld [vmem:[#allocation4 + $0x4] sm:$0xf]
    %v137 = vld [vmem:[#allocation7] sm:$0x3]
    %v140 = vunpack.c.l.b16 %v133
    %v141 = vunpack.c.l.b16 %v134
    %v142 = vpack.c.b16 %v141, %v140
    %vm143 = vcmask 31744
    %v145 = vsel %vm143, %v142, 0
    %vm147 = vcmask 1041408
    %v149 = vsel %vm147, %v137, 0
    %151 = vmatpush.bf16.msra.mxu0 0
    %152 = vmatpush.bf16.msra.mxu0 0
    %153 = vmatpush.bf16.msra.mxu0 0
    %154 = vmatpush.bf16.msra.mxu0 0
    %155 = vmatpush.bf16.msra.mxu0 0
    %156 = vmatpush.bf16.msra.mxu0 0
    %157 = vmatpush.bf16.msra.mxu0 0
    %158 = vmatpush.bf16.msra.mxu0 %v149
    %159 = vmatmul.bf16.gmra.mxu0 %v145
    %v160 = vpop.f32.mrf.mxu0
    %v161 = vadd.f32 0.0, %v160
    %v162 = vpop.f32.mrf.mxu0
    %v163 = vadd.f32 0.0, %v162
    %164 = vdwg.mxu0
    %v167 = vunpack.c.l.b16 %v131
    %v168 = vunpack.c.l.b16 %v132
    %v169 = vpack.c.b16 %v168, %v167
    %v172 = vunpack.c.l.b16 %v135
    %v173 = vunpack.c.l.b16 %v136
    %v174 = vpack.c.b16 %v173, %v172
    %vm176 = vcmask 130048
    %v178 = vsel %vm176, %v169, 0
    %180 = vmatpush.bf16.msra.mxu0 0
    %181 = vmatpush.bf16.msra.mxu0 0
    %182 = vmatpush.bf16.msra.mxu0 0
    %183 = vmatpush.bf16.msra.mxu0 0
    %184 = vmatpush.bf16.msra.mxu0 0
    %185 = vmatpush.bf16.msra.mxu0 0
    %186 = vmatpush.bf16.msra.mxu0 0
    %187 = vmatpush.bf16.msra.mxu0 %v174
    %188 = vmatmul.bf16.gmra.mxu0 %v178
    %v189 = vpop.f32.mrf.mxu0
    %v190 = vadd.f32 %v161, %v189
    %v191 = vpop.f32.mrf.mxu0
    %v192 = vadd.f32 %v163, %v191
    %193 = vdwg.mxu0
    %v194 = vld [vmem:[#allocation9] sm:$0x1]
    %v196 = vperm.slane %v194, 0
    %v198 = vadd.f32 %v190, %v196
    %v199 = vadd.f32 %v192, %v196
    %v200 = vmax.f32 %v198, 0.0
    %v201 = vmax.f32 %v199, 0.0
    %v202 = vpack.c.bf16 %v201, %v200
    %v203 = vld [vmem:[#allocation10] sm:$0xf]
    %v204 = vld [vmem:[#allocation10 + $0x4] sm:$0xf]
    %v205 = vld [vmem:[#allocation10 + $0x8] sm:$0xf]
    %v206 = vld [vmem:[#allocation10 + $0xc] sm:$0xf]
    %v207 = vld [vmem:[#allocation10 + $0x10] sm:$0xf]
    %v208 = vld [vmem:[#allocation10 + $0x14] sm:$0xf]
    %v209 = vld [vmem:[#allocation10 + $0x18] sm:$0xf]
    %v210 = vld [vmem:[#allocation10 + $0x1c] sm:$0xf]
    %v211 = vld [vmem:[#allocation10 + $0x20] sm:$0xf]
    %v212 = vld [vmem:[#allocation10 + $0x24] sm:$0xf]
    %v213 = vld [vmem:[#allocation10 + $0x28] sm:$0xf]
    %v214 = vld [vmem:[#allocation10 + $0x2c] sm:$0xf]
    %v215 = vld [vmem:[#allocation10 + $0x30] sm:$0xf]
    %v216 = vld [vmem:[#allocation10 + $0x34] sm:$0xf]
    %v217 = vld [vmem:[#allocation10 + $0x38] sm:$0xf]
    %v218 = vld [vmem:[#allocation10 + $0x3c] sm:$0xf]
    %v219 = vld [vmem:[%s6] sm:$0x1]
    %v221 = vperm.slane %v219, 0
    %v239 = vunpack.c.l.b16 %v203
    %v240 = vunpack.c.l.b16 %v204
    %v241 = vunpack.c.l.b16 %v205
    %v242 = vunpack.c.l.b16 %v206
    %v243 = vunpack.c.l.b16 %v207
    %v244 = vunpack.c.l.b16 %v208
    %v245 = vunpack.c.l.b16 %v209
    %v246 = vunpack.c.l.b16 %v210
    %v247 = vunpack.c.l.b16 %v211
    %v248 = vunpack.c.l.b16 %v212
    %v249 = vunpack.c.l.b16 %v213
    %v250 = vunpack.c.l.b16 %v214
    %v251 = vunpack.c.l.b16 %v215
    %v252 = vunpack.c.l.b16 %v216
    %v253 = vunpack.c.l.b16 %v217
    %v254 = vunpack.c.l.b16 %v218
    %v255 = vpack.c.b16 %v240, %v239
    %v256 = vpack.c.b16 %v242, %v241
    %v257 = vpack.c.b16 %v244, %v243
    %v258 = vpack.c.b16 %v246, %v245
    %v259 = vpack.c.b16 %v248, %v247
    %v260 = vpack.c.b16 %v250, %v249
    %v261 = vpack.c.b16 %v252, %v251
    %v262 = vpack.c.b16 %v254, %v253
    %271 = vmatpush.bf16.msra.mxu0 %v262
    %272 = vmatpush.bf16.msra.mxu0 %v261
    %273 = vmatpush.bf16.msra.mxu0 %v260
    %274 = vmatpush.bf16.msra.mxu0 %v259
    %275 = vmatpush.bf16.msra.mxu0 %v258
    %276 = vmatpush.bf16.msra.mxu0 %v257
    %277 = vmatpush.bf16.msra.mxu0 %v256
    %278 = vmatpush.bf16.msra.mxu0 %v255
    %279 = vmatmul.bf16.gmra.mxu0 %v202
    %v280 = vpop.f32.mrf.mxu0
    %v281 = vadd.f32 %v221, %v280
    %v282 = vpop.f32.mrf.mxu0
    %v283 = vadd.f32 %v221, %v282
    %284 = vdwg.mxu0
    %v285 = vmax.f32 %v281, 0.0
    %v286 = vmax.f32 %v283, 0.0
    %v287 = vld [vmem:[%s7] sm:$0x1]
    %v288 = vunpack.c.l.bf16 %v287
    %v289 = vperm.slane %v288, 0
    %v290 = vmul.f32 %v285, %v289
    %v291 = vmul.f32 %v286, %v289
    %292 = vadd.xlane.f32.xlu0 %v290
    %v293 = vpop.xlane.xlu0 %292
    %294 = vadd.xlane.f32.xlu0 %v291
    %v295 = vpop.xlane.xlu0 %294
    %s296 = sld [smem:[#allocation2]]
    %v297 = vstv %s296
    %v298 = vadd.f32 %v293, %v297
    %v299 = vadd.f32 %v295, %v297
    %v300 = vld [vmem:[%s9] sm:$0xf]
    %v301 = vld [vmem:[%s9 + $0x4] sm:$0xf]
    %v302 = vld [vmem:[%s10] sm:$0x3]
    %v304 = vsel %vm147, %v302, 0
    %306 = vmatpush.bf16.msra.mxu0 0
    %307 = vmatpush.bf16.msra.mxu0 0
    %308 = vmatpush.bf16.msra.mxu0 0
    %309 = vmatpush.bf16.msra.mxu0 0
    %310 = vmatpush.bf16.msra.mxu0 0
    %311 = vmatpush.bf16.msra.mxu0 0
    %312 = vmatpush.bf16.msra.mxu0 0
    %313 = vmatpush.bf16.msra.mxu0 %v304
    %314 = vmatmul.bf16.gmra.mxu0 %v145
    %v315 = vpop.f32.mrf.mxu0
    %v316 = vadd.f32 0.0, %v315
    %v317 = vpop.f32.mrf.mxu0
    %v318 = vadd.f32 0.0, %v317
    %319 = vdwg.mxu0
    %v322 = vunpack.c.l.b16 %v300
    %v323 = vunpack.c.l.b16 %v301
    %v324 = vpack.c.b16 %v323, %v322
    %326 = vmatpush.bf16.msra.mxu0 0
    %327 = vmatpush.bf16.msra.mxu0 0
    %328 = vmatpush.bf16.msra.mxu0 0
    %329 = vmatpush.bf16.msra.mxu0 0
    %330 = vmatpush.bf16.msra.mxu0 0
    %331 = vmatpush.bf16.msra.mxu0 0
    %332 = vmatpush.bf16.msra.mxu0 0
    %333 = vmatpush.bf16.msra.mxu0 %v324
    %334 = vmatmul.bf16.gmra.mxu0 %v178
    %v335 = vpop.f32.mrf.mxu0
    %v336 = vadd.f32 %v316, %v335
    %v337 = vpop.f32.mrf.mxu0
    %v338 = vadd.f32 %v318, %v337
    %339 = vdwg.mxu0
    %v340 = vld [vmem:[%s11] sm:$0x1]
    %v342 = vperm.slane %v340, 0
    %v344 = vadd.f32 %v336, %v342
    %v345 = vadd.f32 %v338, %v342
    %v346 = vmax.f32 %v344, 0.0
    %v347 = vmax.f32 %v345, 0.0
    %v348 = vpack.c.bf16 %v347, %v346
    %v349 = vld [vmem:[#allocation12] sm:$0xf]
    %v350 = vld [vmem:[#allocation12 + $0x4] sm:$0xf]
    %v351 = vld [vmem:[#allocation12 + $0x8] sm:$0xf]
    %v352 = vld [vmem:[#allocation12 + $0xc] sm:$0xf]
    %v353 = vld [vmem:[#allocation12 + $0x10] sm:$0xf]
    %v354 = vld [vmem:[#allocation12 + $0x14] sm:$0xf]
    %v355 = vld [vmem:[#allocation12 + $0x18] sm:$0xf]
    %v356 = vld [vmem:[#allocation12 + $0x1c] sm:$0xf]
    %v357 = vld [vmem:[#allocation12 + $0x20] sm:$0xf]
    %v358 = vld [vmem:[#allocation12 + $0x24] sm:$0xf]
    %v359 = vld [vmem:[#allocation12 + $0x28] sm:$0xf]
    %v360 = vld [vmem:[#allocation12 + $0x2c] sm:$0xf]
    %v361 = vld [vmem:[#allocation12 + $0x30] sm:$0xf]
    %v362 = vld [vmem:[#allocation12 + $0x34] sm:$0xf]
    %v363 = vld [vmem:[#allocation12 + $0x38] sm:$0xf]
    %v364 = vld [vmem:[#allocation12 + $0x3c] sm:$0xf]
    %v365 = vld [vmem:[%s13] sm:$0x1]
    %v367 = vperm.slane %v365, 0
    %v385 = vunpack.c.l.b16 %v349
    %v386 = vunpack.c.l.b16 %v350
    %v387 = vunpack.c.l.b16 %v351
    %v388 = vunpack.c.l.b16 %v352
    %v389 = vunpack.c.l.b16 %v353
    %v390 = vunpack.c.l.b16 %v354
    %v391 = vunpack.c.l.b16 %v355
    %v392 = vunpack.c.l.b16 %v356
    %v393 = vunpack.c.l.b16 %v357
    %v394 = vunpack.c.l.b16 %v358
    %v395 = vunpack.c.l.b16 %v359
    %v396 = vunpack.c.l.b16 %v360
    %v397 = vunpack.c.l.b16 %v361
    %v398 = vunpack.c.l.b16 %v362
    %v399 = vunpack.c.l.b16 %v363
    %v400 = vunpack.c.l.b16 %v364
    %v401 = vpack.c.b16 %v386, %v385
    %v402 = vpack.c.b16 %v388, %v387
    %v403 = vpack.c.b16 %v390, %v389
    %v404 = vpack.c.b16 %v392, %v391
    %v405 = vpack.c.b16 %v394, %v393
    %v406 = vpack.c.b16 %v396, %v395
    %v407 = vpack.c.b16 %v398, %v397
    %v408 = vpack.c.b16 %v400, %v399
    %417 = vmatpush.bf16.msra.mxu0 %v408
    %418 = vmatpush.bf16.msra.mxu0 %v407
    %419 = vmatpush.bf16.msra.mxu0 %v406
    %420 = vmatpush.bf16.msra.mxu0 %v405
    %421 = vmatpush.bf16.msra.mxu0 %v404
    %422 = vmatpush.bf16.msra.mxu0 %v403
    %423 = vmatpush.bf16.msra.mxu0 %v402
    %424 = vmatpush.bf16.msra.mxu0 %v401
    %425 = vmatmul.bf16.gmra.mxu0 %v348
    %v426 = vpop.f32.mrf.mxu0
    %v427 = vadd.f32 %v367, %v426
    %v428 = vpop.f32.mrf.mxu0
    %v429 = vadd.f32 %v367, %v428
    %430 = vdwg.mxu0
    %v431 = vmax.f32 %v427, 0.0
    %v432 = vmax.f32 %v429, 0.0
    %v433 = vld [vmem:[%s14] sm:$0x1]
    %v434 = vunpack.c.l.bf16 %v433
    %v435 = vperm.slane %v434, 0
    %v436 = vmul.f32 %v431, %v435
    %v437 = vmul.f32 %v432, %v435
    %438 = vadd.xlane.f32.xlu0 %v436
    %v439 = vpop.xlane.xlu0 %438
    %440 = vadd.xlane.f32.xlu0 %v437
    %v441 = vpop.xlane.xlu0 %440
    %s442 = sld [smem:[#allocation3]]
    %v443 = vstv %s442
    %v444 = vadd.f32 %v439, %v443
    %v445 = vadd.f32 %v441, %v443
    %v448 = vlaneseq
    %v449 = vand.u32 %v448, 127
    %v450 = vperm.slane %v298, %v449
    %v451 = vadd.s32 %v449, 4294967288
    %v452 = vperm.slane %v299, %v451
    %vm453 = vcmask 130112
    %v454 = vsel %vm453, %v452, %v450
    %v458 = vperm.slane %v444, %v449
    %v459 = vperm.slane %v445, %v451
    %v460 = vsel %vm453, %v459, %v458
    %vm462 = vcmask 1040384
    %v463 = vsel %vm462, %v454, %v460
    %vm464 = vcmask 123904
    %465 = vst.msk [vmem:[#allocation13] sm:$0x3] %vm464, %v463
    // Predicated region
    $region86: #{tpu_custom_call.1} parent=1 // pred_check
      _
    $region87: #{tpu_custom_call.1} parent=1 // pred_check_branch
      %467 = sbr.rel (0) target = $region89
    $region88: #{tpu_custom_call.1} parent=1 // pred_region
      %469 = vsyncadd [#allocation6], 0
      %s471 = sshll.u32 [#allocation13], 4
      %s472 = int_to_ptr.vmem [resolvable:$true] %s471
      %s473 = sshll.u32 %s16, 4
      %s474 = int_to_ptr.hbm [resolvable:$true] %s473
      %476 = dma.vmem_to_hbm [thread:$0]  %s472, 32, %s474, [#allocation6]
    $region89: #{tpu_custom_call.1} parent=1 // pred_fallthru
      _
    // Predicated region
    $region90: #{tpu_custom_call.1} parent=1 // pred_check
      _
    $region91: #{tpu_custom_call.1} parent=1 // pred_check_branch
      %478 = sbr.rel (0) target = $region93
    $region92: #{tpu_custom_call.1} parent=1 // pred_region
      %480 = dma.done [#allocation6], 32
    $region93: #{tpu_custom_call.1} parent=1 // pred_fallthru
      _
    %481 = vsyncpa [#allocation5], 1
    %482 = vsyncpa [#allocation8], 1
    %483 = vsyncpa [#allocation11], 1
    %484 = vsyncpa [#allocation6], 1

</llo_original>
